<compile_context>
chip_gen: v7x
topology: tpu7x:2x2x1
jax: 0.10.0
libtpu: 0.0.40
codegen_flags: <defaults>
</compile_context>

<pallas_src>
import jax
import jax.numpy as jnp
from jax.experimental import pallas as pl
from jax.experimental.pallas import tpu as pltpu


def _round_up(x, m):
    return ((x + m - 1) // m) * m


def dqn_kernel(x_ref, w1_ref, b1_ref, w2_ref, b2_ref, w3_ref, b3_ref, out_ref):
    # (features, batch) layout: batch on the 128-lane axis -> full unmasked
    # vregs and MXU N = batch.  First matmul runs in x's dtype (f32, or bf16
    # when the replay buffer is bf16); everything after stays f32 since h1/h2
    # never leave VMEM (narrowing them saves zero HBM bandwidth).
    h1 = jnp.dot(w1_ref[...], x_ref[...], preferred_element_type=jnp.float32)
    h1 = jnp.maximum(h1 + b1_ref[...], 0.0)                       # (l1, tile_b) f32

    h2 = jnp.dot(w2_ref[...], h1, preferred_element_type=jnp.float32)
    h2 = jnp.maximum(h2 + b2_ref[...], 0.0)                       # (l2, tile_b) f32

    q = jnp.dot(w3_ref[...], h2, preferred_element_type=jnp.float32)
    out_ref[...] = (q + b3_ref[...]).astype(out_ref.dtype)        # (n_act_pad, tile_b)


def _choose_tile(B, tile_b, per_col_bytes):
    """Pick the batch tile (always a multiple of 128 lanes).

    Big enough to amortize the ~0.35 us/grid-step overhead, small enough to fit
    comfortably under a 32 MiB VMEM budget (v7x-safe), and split into >= 2
    blocks when B allows so the "parallel" grid axis can use both v7x cores.
    """
    vmem_cap = max(128, ((24 * 1024 * 1024) // per_col_bytes) // 128 * 128)
    two_way = max(128, _round_up(pl.cdiv(B, 2), 128))   # >= 2 blocks on big batches
    tile = min(_round_up(max(int(tile_b), 128), 128), vmem_cap, two_way)
    return max(tile, 128)


def dqn_forward_fm(xt, params, *, tile_b=16384, return_batch_major=True):
    """Fused DQN forward on feature-major input.

    xt: (n_obs, B) — preferred source layout (e.g. a feature-major replay
    buffer): no transpose / pad / cast passes over x before the kernel.
    Returns (B, n_actions) if return_batch_major, else the raw (n_act_pad, B)
    slab so consumers (argmax over actions, TD-target math) can stay in the
    lane-dense layout and skip another HBM pass.
    """
    w1, b1 = params["w1"], params["b1"]      # (l1, n_obs), (l1, 1)
    w2, b2 = params["w2"], params["b2"]      # (l2, l1),    (l2, 1)
    w3, b3 = params["w3"], params["b3"]      # (n_act, l2), (n_act, 1)

    n_obs, B = xt.shape
    l1, l2 = w1.shape[0], w2.shape[0]
    n_act = w3.shape[0]

    # Only w1 is matched to x's dtype (weights are tiny, cast is free); the
    # rest of the network stays f32.  Do NOT cast an f32 x to bf16 here — that
    # would be an extra full HBM pass over the only batch-scaling array.
    w1c = w1.astype(xt.dtype)
    w2c = w2.astype(jnp.float32)
    w3c = w3.astype(jnp.float32)
    b1c = b1.astype(jnp.float32)
    b2c = b2.astype(jnp.float32)
    b3c = b3.astype(jnp.float32)

    # Pad action rows to a full 8-sublane tile -> unmasked output stores.
    n_act_pad = max(8, _round_up(n_act, 8))
    if n_act_pad != n_act:
        w3c = jnp.pad(w3c, ((0, n_act_pad - n_act), (0, 0)))
        b3c = jnp.pad(b3c, ((0, n_act_pad - n_act), (0, 0)))

    # VMEM bytes per batch column: double-buffered x + double-buffered out (f32)
    # + f32 h1/h2 temporaries.  Weights/biases are negligible and VMEM-resident.
    per_col = 2 * n_obs * jnp.dtype(xt.dtype).itemsize + 2 * n_act_pad * 4 + (l1 + l2) * 4
    tile = _choose_tile(B, tile_b, per_col)
    grid = (pl.cdiv(B, tile),)   # no jnp.pad: ragged last block is masked on writeback

    # Weights/biases: full block, constant index_map -> VMEM-resident across tiles.
    full = lambda a: pl.BlockSpec(a.shape, lambda i: (0,) * a.ndim)

    # TODO(synk): for tiny tiles one could add pipeline_mode=pl.Buffered(3) on
    # the x spec; with large default tiles + the XLA small-batch fallback it is
    # not needed.
    out_t = pl.pallas_call(
        dqn_kernel,
        out_shape=jax.ShapeDtypeStruct((n_act_pad, B), jnp.float32),
        grid=grid,
        in_specs=[
            pl.BlockSpec((n_obs, tile), lambda i: (0, i)),   # x tile (batch on lanes)
            full(w1c), full(b1c),
            full(w2c), full(b2c),
            full(w3c), full(b3c),
        ],
        out_specs=pl.BlockSpec((n_act_pad, tile), lambda i: (0, i)),
        compiler_params=pltpu.CompilerParams(
            dimension_semantics=("parallel",),      # shard batch tiles across v7x TCs
            vmem_limit_bytes=32 * 1024 * 1024,      # tile clamp keeps us well under this
        ),
    )(xt, w1c, b1c, w2c, b2c, w3c, b3c)

    if return_batch_major:
        # Back to PyTorch (B, n_actions) layout; prefer return_batch_major=False
        # when the consumer can work on the (n_act_pad, B) slab directly.
        return jnp.transpose(out_t[:n_act])
    return out_t


def _dqn_xla(x, params):
    """Plain-XLA path for tiny batches where pallas_call overhead dominates."""
    h1 = jnp.maximum(x @ params["w1"].T + params["b1"].T, 0.0)
    h2 = jnp.maximum(h1 @ params["w2"].T + params["b2"].T, 0.0)
    return h2 @ params["w3"].T + params["b3"].T


def dqn_forward(x, params, *, tile_b=16384, min_pallas_batch=128):
    """PyTorch-layout entry point.  x: (B, n_obs) -> (B, n_actions) f32."""
    B = x.shape[0]
    if B <= min_pallas_batch:
        return _dqn_xla(x.astype(jnp.float32), params)
    # One transpose pass; callers with a feature-major replay buffer should use
    # dqn_forward_fm directly and skip it.
    xt = jnp.transpose(x)
    return dqn_forward_fm(xt, params, tile_b=tile_b, return_batch_major=True)


def init_params(key, n_observations, layer1_dims, layer2_dims, n_actions):
    """nn.Linear-style init (U[-1/sqrt(fan_in), +]); PyTorch-native (out, in) weights."""
    def linear(k, fan_in, fan_out):
        kw, kb = jax.random.split(k)
        bound = 1.0 / float(fan_in) ** 0.5
        w = jax.random.uniform(kw, (fan_out, fan_in), jnp.float32, -bound, bound)
        b = jax.random.uniform(kb, (fan_out, 1), jnp.float32, -bound, bound)
        return w, b

    k1, k2, k3 = jax.random.split(key, 3)
    w1, b1 = linear(k1, n_observations, layer1_dims)
    w2, b2 = linear(k2, layer1_dims, layer2_dims)
    w3, b3 = linear(k3, layer2_dims, n_actions)
    return {"w1": w1, "b1": b1, "w2": w2, "b2": b2, "w3": w3, "b3": b3}


def dqn_reference(x, params):
    """Pure-JAX f32 reference in the PyTorch (B, features) layout."""
    h1 = jnp.maximum(x @ params["w1"].T + params["b1"].T, 0.0)
    h2 = jnp.maximum(h1 @ params["w2"].T + params["b2"].T, 0.0)
    return h2 @ params["w3"].T + params["b3"].T


if __name__ == "__main__":
    # Small shapes consistent with a DQN on a low-dim observation space.
    n_observations, layer1_dims, layer2_dims, n_actions = 8, 32, 32, 4

    key = jax.random.PRNGKey(0)
    kp, kx1, kx2 = jax.random.split(key, 3)
    params = init_params(kp, n_observations, layer1_dims, layer2_dims, n_actions)

    # 1) Tiny batch -> XLA fallback (pallas_call fixed overhead not worth it).
    x_small = jax.random.normal(kx1, (8, n_observations), dtype=jnp.float32)
    out_small = dqn_forward(x_small, params)
    jax.block_until_ready(out_small)
    ref_small = dqn_reference(x_small, params)
    assert out_small.shape == (8, n_actions)
    assert jnp.allclose(out_small, ref_small, atol=1e-4, rtol=1e-4)

    # 2) Replay-sized batch -> Pallas path: 2 blocks of 256 lanes, second block
    #    ragged (no jnp.pad; masked writeback), "parallel" grid across cores.
    x_big = jax.random.normal(kx2, (300, n_observations), dtype=jnp.float32)
    out_big = dqn_forward(x_big, params)
    jax.block_until_ready(out_big)
    ref_big = dqn_reference(x_big, params)
    assert out_big.shape == (300, n_actions)
    assert jnp.allclose(out_big, ref_big, atol=1e-4, rtol=1e-4)

    # 3) Feature-major bf16 replay buffer: no wrapper transpose/pad/cast passes
    #    over x; result kept feature-major (n_act_pad, B) for the consumer.
    xt_bf16 = jnp.transpose(x_big).astype(jnp.bfloat16)
    out_fm = dqn_forward_fm(xt_bf16, params, return_batch_major=False)
    jax.block_until_ready(out_fm)
    assert out_fm.shape == (8, 300)   # action rows padded 4 -> 8
    q_fm = out_fm[:n_actions].T.astype(jnp.float32)
    assert jnp.allclose(q_fm, ref_big, atol=5e-2, rtol=5e-2)

    print("KERNEL_OK")
</pallas_src>

<mosaic_0001>
module attributes {stable_mosaic.version = 11 : i64} {
  func.func @dqn_kernel(%arg0: i32, %arg1: memref<8x256xf32, #tpu.memory_space<vmem>>, %arg2: memref<32x8xf32, #tpu.memory_space<vmem>>, %arg3: memref<32x1xf32, #tpu.memory_space<vmem>>, %arg4: memref<32x32xf32, #tpu.memory_space<vmem>>, %arg5: memref<32x1xf32, #tpu.memory_space<vmem>>, %arg6: memref<8x32xf32, #tpu.memory_space<vmem>>, %arg7: memref<8x1xf32, #tpu.memory_space<vmem>>, %arg8: memref<8x256xf32, #tpu.memory_space<vmem>>) attributes {dimension_semantics = [#tpu.dimension_semantics<parallel>], iteration_bounds = array<i64: 2>, scalar_prefetch = 0 : i64, scratch_operands = 0 : i64, tpu.core_type = #tpu.core_type<tc>, window_params = [{transform_indices = @transform_0, window_bounds = array<i64: 8, 256>}, {pipeline_mode = #tpu.pipeline_mode<synchronous>, transform_indices = @transform_1, window_bounds = array<i64: 32, 8>}, {pipeline_mode = #tpu.pipeline_mode<synchronous>, transform_indices = @transform_2, window_bounds = array<i64: 32, 1>}, {pipeline_mode = #tpu.pipeline_mode<synchronous>, transform_indices = @transform_3, window_bounds = array<i64: 32, 32>}, {pipeline_mode = #tpu.pipeline_mode<synchronous>, transform_indices = @transform_4, window_bounds = array<i64: 32, 1>}, {pipeline_mode = #tpu.pipeline_mode<synchronous>, transform_indices = @transform_5, window_bounds = array<i64: 8, 32>}, {pipeline_mode = #tpu.pipeline_mode<synchronous>, transform_indices = @transform_6, window_bounds = array<i64: 8, 1>}, {transform_indices = @transform_7, window_bounds = array<i64: 8, 256>}]} {
    %c0 = arith.constant 0 : index
    %c0_0 = arith.constant 0 : index
    %0 = vector.load %arg2[%c0, %c0_0] : memref<32x8xf32, #tpu.memory_space<vmem>>, vector<32x8xf32>
    %c0_1 = arith.constant 0 : index
    %c0_2 = arith.constant 0 : index
    %1 = vector.load %arg1[%c0_1, %c0_2] : memref<8x256xf32, #tpu.memory_space<vmem>>, vector<8x256xf32>
    %cst = arith.constant dense<0.000000e+00> : vector<32x256xf32>
    %2 = tpu.matmul %0, %1, %cst {dimension_numbers = #tpu.dot_dimension_numbers<[1], [0], [0], [1], [0, 0, 1, 1], [], []>} : vector<32x8xf32>, vector<8x256xf32>, vector<32x256xf32> -> vector<32x256xf32>
    %c0_3 = arith.constant 0 : index
    %c0_4 = arith.constant 0 : index
    %3 = vector.load %arg3[%c0_3, %c0_4] : memref<32x1xf32, #tpu.memory_space<vmem>>, vector<32x1xf32>
    %4 = vector.broadcast %3 : vector<32x1xf32> to vector<32x256xf32>
    %5 = arith.addf %2, %4 : vector<32x256xf32>
    %cst_5 = arith.constant 0.000000e+00 : f32
    %6 = vector.broadcast %cst_5 : f32 to vector<32x256xf32>
    %7 = arith.maximumf %5, %6 : vector<32x256xf32>
    %c0_6 = arith.constant 0 : index
    %c0_7 = arith.constant 0 : index
    %8 = vector.load %arg4[%c0_6, %c0_7] : memref<32x32xf32, #tpu.memory_space<vmem>>, vector<32x32xf32>
    %cst_8 = arith.constant dense<0.000000e+00> : vector<32x256xf32>
    %9 = tpu.matmul %8, %7, %cst_8 {dimension_numbers = #tpu.dot_dimension_numbers<[1], [0], [0], [1], [0, 0, 1, 1], [], []>} : vector<32x32xf32>, vector<32x256xf32>, vector<32x256xf32> -> vector<32x256xf32>
    %c0_9 = arith.constant 0 : index
    %c0_10 = arith.constant 0 : index
    %10 = vector.load %arg5[%c0_9, %c0_10] : memref<32x1xf32, #tpu.memory_space<vmem>>, vector<32x1xf32>
    %11 = vector.broadcast %10 : vector<32x1xf32> to vector<32x256xf32>
    %12 = arith.addf %9, %11 : vector<32x256xf32>
    %cst_11 = arith.constant 0.000000e+00 : f32
    %13 = vector.broadcast %cst_11 : f32 to vector<32x256xf32>
    %14 = arith.maximumf %12, %13 : vector<32x256xf32>
    %c0_12 = arith.constant 0 : index
    %c0_13 = arith.constant 0 : index
    %15 = vector.load %arg6[%c0_12, %c0_13] : memref<8x32xf32, #tpu.memory_space<vmem>>, vector<8x32xf32>
    %cst_14 = arith.constant dense<0.000000e+00> : vector<8x256xf32>
    %16 = tpu.matmul %15, %14, %cst_14 {dimension_numbers = #tpu.dot_dimension_numbers<[1], [0], [0], [1], [0, 0, 1, 1], [], []>} : vector<8x32xf32>, vector<32x256xf32>, vector<8x256xf32> -> vector<8x256xf32>
    %c0_15 = arith.constant 0 : index
    %c0_16 = arith.constant 0 : index
    %17 = vector.load %arg7[%c0_15, %c0_16] : memref<8x1xf32, #tpu.memory_space<vmem>>, vector<8x1xf32>
    %18 = vector.broadcast %17 : vector<8x1xf32> to vector<8x256xf32>
    %19 = arith.addf %16, %18 : vector<8x256xf32>
    %c0_17 = arith.constant 0 : index
    %c0_18 = arith.constant 0 : index
    %20 = vector.load %arg8[%c0_17, %c0_18] : memref<8x256xf32, #tpu.memory_space<vmem>>, vector<8x256xf32>
    tpu.vector_store %arg8[%c0_17, %c0_18], %19 {strides = array<i32>} : memref<8x256xf32, #tpu.memory_space<vmem>>, vector<8x256xf32>,
    return
  }
  func.func @transform_0(%arg0: i32) -> (i32, i32) {
    %c0_i32 = arith.constant 0 : i32
    %c0_i32_0 = arith.constant 0 : i32
    return %c0_i32, %arg0 : i32, i32
  }
  func.func @transform_1(%arg0: i32) -> (i32, i32) {
    %c0_i32 = arith.constant 0 : i32
    %c0_i32_0 = arith.constant 0 : i32
    %c0_i32_1 = arith.constant 0 : i32
    return %c0_i32, %c0_i32_0 : i32, i32
  }
  func.func @transform_2(%arg0: i32) -> (i32, i32) {
    %c0_i32 = arith.constant 0 : i32
    %c0_i32_0 = arith.constant 0 : i32
    %c0_i32_1 = arith.constant 0 : i32
    return %c0_i32, %c0_i32_0 : i32, i32
  }
  func.func @transform_3(%arg0: i32) -> (i32, i32) {
    %c0_i32 = arith.constant 0 : i32
    %c0_i32_0 = arith.constant 0 : i32
    %c0_i32_1 = arith.constant 0 : i32
    return %c0_i32, %c0_i32_0 : i32, i32
  }
  func.func @transform_4(%arg0: i32) -> (i32, i32) {
    %c0_i32 = arith.constant 0 : i32
    %c0_i32_0 = arith.constant 0 : i32
    %c0_i32_1 = arith.constant 0 : i32
    return %c0_i32, %c0_i32_0 : i32, i32
  }
  func.func @transform_5(%arg0: i32) -> (i32, i32) {
    %c0_i32 = arith.constant 0 : i32
    %c0_i32_0 = arith.constant 0 : i32
    %c0_i32_1 = arith.constant 0 : i32
    return %c0_i32, %c0_i32_0 : i32, i32
  }
  func.func @transform_6(%arg0: i32) -> (i32, i32) {
    %c0_i32 = arith.constant 0 : i32
    %c0_i32_0 = arith.constant 0 : i32
    %c0_i32_1 = arith.constant 0 : i32
    return %c0_i32, %c0_i32_0 : i32, i32
  }
  func.func @transform_7(%arg0: i32) -> (i32, i32) {
    %c0_i32 = arith.constant 0 : i32
    %c0_i32_0 = arith.constant 0 : i32
    return %c0_i32, %arg0 : i32, i32
  }
}

</mosaic_0001>

<llo_original>
// kernel: tpu_custom_call.1
$region0: #{tpu_custom_call.1}
  #allocation0 [shape = 'u32[]', space=smem, size = 0x4, offset = 0x4, fixed_abs, tag = 'smem constant byte address 0x4 - core index']
  #allocation1 [shape = 'u32[144,128]{1,0:T(1,128)}', space=vmem, size = 0x12000, scoped, tag = 'internal scratch']
  %s0 = inlined_call_operand.vmem [shape: f32[8,300], index: 0, kind: input, shape index: {}]
  %s1 = inlined_call_operand.vmem [shape: f32[32,8], index: 1, kind: input, shape index: {}]
  %s2 = inlined_call_operand.vmem [shape: f32[32,1], index: 2, kind: input, shape index: {}]
  %s3 = inlined_call_operand.vmem [shape: f32[32,32], index: 3, kind: input, shape index: {}]
  %s4 = inlined_call_operand.vmem [shape: f32[32,1], index: 4, kind: input, shape index: {}]
  %s5 = inlined_call_operand.vmem [shape: f32[8,32], index: 5, kind: input, shape index: {}]
  %s6 = inlined_call_operand.vmem [shape: f32[8,1], index: 6, kind: input, shape index: {}]
  %s7 = inlined_call_operand.hbm [shape: f32[8,300], index: 7, kind: output, shape index: {}]
  %s8 = sld [smem:[#allocation0]]
  $region61: #{tpu_custom_call.1} parent=0
    _
  %s10 = ssub.s32 1, %s8
  %s11 = scalar_select 0, %s10, %s8
  $region1: #{tpu_custom_call.1} parent=0
    #allocation2 [shape = 'u8[16384]{0}', space=vmem, size = 0x4000, scoped, tag = 'output window, operand 0']
    #allocation3 [shape = 's32[2]{0}', space=sflag, size = 0x8, scoped, tag = 'scoped memory for tpu_custom_call.1']
    %12 = vsyncpa [#allocation3], 0
    %s13 = scalar_lea.sflag [#allocation3], 1
    %14 = vsyncpa %s13, 0
    loop: start=0, step=1, limit=4
    $region2: #{tpu_custom_call.1} parent=1 // loop_pre_header
      _
    $region3: #{tpu_custom_call.1} parent=1 // loop_header
      %s16 = sphi 0, %s20
      %p17 = scmp.ge.s32.totalorder %s16, 4
      %s26 = sphi 0, %s28
      %s29 = sphi 0, %s26
      %s30 = sphi 0, %s29
      %s46 = sphi 0, %s30
      %s50 = sphi 0, %s50
      %s52 = sphi 0, %s50
      %s53 = sphi 0, %s52
      %s67 = sphi 0, %s53
      %s71 = sphi 0, %s71
      %s73 = sphi 0, %s71
      %s74 = sphi 0, %s73
      %s88 = sphi 0, %s74
      %s92 = sphi 0, %s92
      %s94 = sphi 0, %s92
      %s95 = sphi 0, %s94
      %s109 = sphi 0, %s95
      %s113 = sphi 0, %s113
      %s115 = sphi 0, %s113
      %s116 = sphi 0, %s115
      %s130 = sphi 0, %s116
      %s134 = sphi 0, %s134
      %s136 = sphi 0, %s134
      %s137 = sphi 0, %s136
      %s151 = sphi 0, %s137
      %s155 = sphi 0, %s155
      %s157 = sphi 0, %s155
      %s158 = sphi 0, %s157
      %s172 = sphi 0, %s158
      %s178 = sphi 0, %s180
      %s181 = sphi 0, %s178
      %s182 = sphi 0, %s181
      %s198 = sphi 0, %s182
    $region4: #{tpu_custom_call.1} parent=1 // loop_header_branch
      %19 = sbr.rel (%p17) target = $region8
    $region5: #{tpu_custom_call.1} parent=1 // loop_body
      %s21 = ssub.s32 %s16, 1
      %s22 = ssub.s32 %s16, 2
      %s23 = sadd.s32 %s16, 1
      %s24 = ssub.s32 %s16, %s23
      %p25 = scmp.eq.s32.totalorder %s24, 0
      %s27 = sadd.s32 %s26, 1
      %s28 = scalar_select %p25, %s26, %s27
      %p31 = pneg %p25
      %p32 = scmp.eq.s32.totalorder %s16, 1
      %p33 = por %p31, %p32
      %p34 = scmp.ne.s32.totalorder %s26, %s29
      %p35 = scmp.eq.s32.totalorder %s16, 0
      %p36 = por %p34, %p35
      %p37 = scmp.ne.s32.totalorder %s26, %s29
      %p38 = scmp.eq.s32.totalorder %s21, 1
      %p39 = por %p37, %p38
      %p40 = scmp.ne.s32.totalorder %s29, %s30
      %p41 = scmp.eq.s32.totalorder %s21, 0
      %p42 = por %p40, %p41
      %p43 = scmp.ne.s32.totalorder %s29, %s30
      %p44 = scmp.eq.s32.totalorder %s22, 1
      %p45 = por %p43, %p44
      %p47 = scmp.ne.s32.totalorder %s30, %s46
      %p48 = scmp.eq.s32.totalorder %s22, 0
      %p49 = por %p47, %p48
      %s51 = sadd.s32 %s50, 1
      %p54 = scmp.eq.s32.totalorder %s16, 1
      %p55 = scmp.ne.s32.totalorder %s50, %s52
      %p56 = scmp.eq.s32.totalorder %s16, 0
      %p57 = por %p55, %p56
      %p58 = scmp.ne.s32.totalorder %s50, %s52
      %p59 = scmp.eq.s32.totalorder %s21, 1
      %p60 = por %p58, %p59
      %p61 = scmp.ne.s32.totalorder %s52, %s53
      %p62 = scmp.eq.s32.totalorder %s21, 0
      %p63 = por %p61, %p62
      %p64 = scmp.ne.s32.totalorder %s52, %s53
      %p65 = scmp.eq.s32.totalorder %s22, 1
      %p66 = por %p64, %p65
      %p68 = scmp.ne.s32.totalorder %s53, %s67
      %p69 = scmp.eq.s32.totalorder %s22, 0
      %p70 = por %p68, %p69
      %s72 = sadd.s32 %s71, 1
      %p75 = scmp.eq.s32.totalorder %s16, 1
      %p76 = scmp.ne.s32.totalorder %s71, %s73
      %p77 = scmp.eq.s32.totalorder %s16, 0
      %p78 = por %p76, %p77
      %p79 = scmp.ne.s32.totalorder %s71, %s73
      %p80 = scmp.eq.s32.totalorder %s21, 1
      %p81 = por %p79, %p80
      %p82 = scmp.ne.s32.totalorder %s73, %s74
      %p83 = scmp.eq.s32.totalorder %s21, 0
      %p84 = por %p82, %p83
      %p85 = scmp.ne.s32.totalorder %s73, %s74
      %p86 = scmp.eq.s32.totalorder %s22, 1
      %p87 = por %p85, %p86
      %p89 = scmp.ne.s32.totalorder %s74, %s88
      %p90 = scmp.eq.s32.totalorder %s22, 0
      %p91 = por %p89, %p90
      %s93 = sadd.s32 %s92, 1
      %p96 = scmp.eq.s32.totalorder %s16, 1
      %p97 = scmp.ne.s32.totalorder %s92, %s94
      %p98 = scmp.eq.s32.totalorder %s16, 0
      %p99 = por %p97, %p98
      %p100 = scmp.ne.s32.totalorder %s92, %s94
      %p101 = scmp.eq.s32.totalorder %s21, 1
      %p102 = por %p100, %p101
      %p103 = scmp.ne.s32.totalorder %s94, %s95
      %p104 = scmp.eq.s32.totalorder %s21, 0
      %p105 = por %p103, %p104
      %p106 = scmp.ne.s32.totalorder %s94, %s95
      %p107 = scmp.eq.s32.totalorder %s22, 1
      %p108 = por %p106, %p107
      %p110 = scmp.ne.s32.totalorder %s95, %s109
      %p111 = scmp.eq.s32.totalorder %s22, 0
      %p112 = por %p110, %p111
      %s114 = sadd.s32 %s113, 1
      %p117 = scmp.eq.s32.totalorder %s16, 1
      %p118 = scmp.ne.s32.totalorder %s113, %s115
      %p119 = scmp.eq.s32.totalorder %s16, 0
      %p120 = por %p118, %p119
      %p121 = scmp.ne.s32.totalorder %s113, %s115
      %p122 = scmp.eq.s32.totalorder %s21, 1
      %p123 = por %p121, %p122
      %p124 = scmp.ne.s32.totalorder %s115, %s116
      %p125 = scmp.eq.s32.totalorder %s21, 0
      %p126 = por %p124, %p125
      %p127 = scmp.ne.s32.totalorder %s115, %s116
      %p128 = scmp.eq.s32.totalorder %s22, 1
      %p129 = por %p127, %p128
      %p131 = scmp.ne.s32.totalorder %s116, %s130
      %p132 = scmp.eq.s32.totalorder %s22, 0
      %p133 = por %p131, %p132
      %s135 = sadd.s32 %s134, 1
      %p138 = scmp.eq.s32.totalorder %s16, 1
      %p139 = scmp.ne.s32.totalorder %s134, %s136
      %p140 = scmp.eq.s32.totalorder %s16, 0
      %p141 = por %p139, %p140
      %p142 = scmp.ne.s32.totalorder %s134, %s136
      %p143 = scmp.eq.s32.totalorder %s21, 1
      %p144 = por %p142, %p143
      %p145 = scmp.ne.s32.totalorder %s136, %s137
      %p146 = scmp.eq.s32.totalorder %s21, 0
      %p147 = por %p145, %p146
      %p148 = scmp.ne.s32.totalorder %s136, %s137
      %p149 = scmp.eq.s32.totalorder %s22, 1
      %p150 = por %p148, %p149
      %p152 = scmp.ne.s32.totalorder %s137, %s151
      %p153 = scmp.eq.s32.totalorder %s22, 0
      %p154 = por %p152, %p153
      %s156 = sadd.s32 %s155, 1
      %p159 = scmp.eq.s32.totalorder %s16, 1
      %p160 = scmp.ne.s32.totalorder %s155, %s157
      %p161 = scmp.eq.s32.totalorder %s16, 0
      %p162 = por %p160, %p161
      %p163 = scmp.ne.s32.totalorder %s155, %s157
      %p164 = scmp.eq.s32.totalorder %s21, 1
      %p165 = por %p163, %p164
      %p166 = scmp.ne.s32.totalorder %s157, %s158
      %p167 = scmp.eq.s32.totalorder %s21, 0
      %p168 = por %p166, %p167
      %p169 = scmp.ne.s32.totalorder %s157, %s158
      %p170 = scmp.eq.s32.totalorder %s22, 1
      %p171 = por %p169, %p170
      %p173 = scmp.ne.s32.totalorder %s158, %s172
      %p174 = scmp.eq.s32.totalorder %s22, 0
      %p175 = por %p173, %p174
      %s176 = ssub.s32 %s16, %s23
      %p177 = scmp.eq.s32.totalorder %s176, 0
      %s179 = sadd.s32 %s178, 1
      %s180 = scalar_select %p177, %s178, %s179
      %p183 = pneg %p177
      %p184 = scmp.eq.s32.totalorder %s16, 1
      %p185 = por %p183, %p184
      %p186 = scmp.ne.s32.totalorder %s178, %s181
      %p187 = scmp.eq.s32.totalorder %s16, 0
      %p188 = por %p186, %p187
      %p189 = scmp.ne.s32.totalorder %s178, %s181
      %p190 = scmp.eq.s32.totalorder %s21, 1
      %p191 = por %p189, %p190
      %p192 = scmp.ne.s32.totalorder %s181, %s182
      %p193 = scmp.eq.s32.totalorder %s21, 0
      %p194 = por %p192, %p193
      %p195 = scmp.ne.s32.totalorder %s181, %s182
      %p196 = scmp.eq.s32.totalorder %s22, 1
      %p197 = por %p195, %p196
      %p199 = scmp.ne.s32.totalorder %s182, %s198
      %p200 = scmp.eq.s32.totalorder %s22, 0
      %p201 = por %p199, %p200
      %p202 = scmp.le.s32.totalorder 1, %s16
      %p203 = scmp.lt.s32.totalorder %s16, 3
      %p204 = pnand %p202, %p203
      %p205 = pneg %p204
      // Predicated region
      $region9: #{tpu_custom_call.1} parent=5 // pred_check
        _
      $region10: #{tpu_custom_call.1} parent=5 // pred_check_branch
        %207 = sbr.rel (%p204) target = $region12
      $region11: #{tpu_custom_call.1} parent=5 // pred_region
        %s208 = ssub.s32 %s16, 1
        // Predicated region
        $region13: #{tpu_custom_call.1} parent=11 // pred_check
          %p209 = pneg %p63
        $region14: #{tpu_custom_call.1} parent=11 // pred_check_branch
          %211 = sbr.rel (%p209) target = $region16
        $region15: #{tpu_custom_call.1} parent=11 // pred_region
          _
        $region16: #{tpu_custom_call.1} parent=11 // pred_fallthru
          _
        // Predicated region
        $region17: #{tpu_custom_call.1} parent=11 // pred_check
          %p212 = pneg %p84
        $region18: #{tpu_custom_call.1} parent=11 // pred_check_branch
          %214 = sbr.rel (%p212) target = $region20
        $region19: #{tpu_custom_call.1} parent=11 // pred_region
          _
        $region20: #{tpu_custom_call.1} parent=11 // pred_fallthru
          _
        // Predicated region
        $region21: #{tpu_custom_call.1} parent=11 // pred_check
          %p215 = pneg %p105
        $region22: #{tpu_custom_call.1} parent=11 // pred_check_branch
          %217 = sbr.rel (%p215) target = $region24
        $region23: #{tpu_custom_call.1} parent=11 // pred_region
          _
        $region24: #{tpu_custom_call.1} parent=11 // pred_fallthru
          _
        // Predicated region
        $region25: #{tpu_custom_call.1} parent=11 // pred_check
          %p218 = pneg %p126
        $region26: #{tpu_custom_call.1} parent=11 // pred_check_branch
          %220 = sbr.rel (%p218) target = $region28
        $region27: #{tpu_custom_call.1} parent=11 // pred_region
          _
        $region28: #{tpu_custom_call.1} parent=11 // pred_fallthru
          _
        // Predicated region
        $region29: #{tpu_custom_call.1} parent=11 // pred_check
          %p221 = pneg %p147
        $region30: #{tpu_custom_call.1} parent=11 // pred_check_branch
          %223 = sbr.rel (%p221) target = $region32
        $region31: #{tpu_custom_call.1} parent=11 // pred_region
          _
        $region32: #{tpu_custom_call.1} parent=11 // pred_fallthru
          _
        // Predicated region
        $region33: #{tpu_custom_call.1} parent=11 // pred_check
          %p224 = pneg %p168
        $region34: #{tpu_custom_call.1} parent=11 // pred_check_branch
          %226 = sbr.rel (%p224) target = $region36
        $region35: #{tpu_custom_call.1} parent=11 // pred_region
          _
        $region36: #{tpu_custom_call.1} parent=11 // pred_fallthru
          _
      $region12: #{tpu_custom_call.1} parent=5 // pred_fallthru
        _
      %p227 = scmp.lt.s32.totalorder %s16, 2
      // Predicated region
      $region37: #{tpu_custom_call.1} parent=5 // pred_check
        %p228 = pneg %p227
      $region38: #{tpu_custom_call.1} parent=5 // pred_check_branch
        %230 = sbr.rel (%p228) target = $region40
      $region39: #{tpu_custom_call.1} parent=5 // pred_region
        // Predicated region
        $region41: #{tpu_custom_call.1} parent=39 // pred_check
          %p231 = pneg %p36
        $region42: #{tpu_custom_call.1} parent=39 // pred_check_branch
          %233 = sbr.rel (%p231) target = $region44
        $region43: #{tpu_custom_call.1} parent=39 // pred_region
          %s234 = smul.u32 2, %s16
          %s235 = ssub.s32 3, %s234
          %p236 = scmp.lt.s32.totalorder %s235, 2
          %s237 = scalar_select %p236, %s235, 2
          %s238 = smul.u32 128, %s237
          %p239 = scmp.lt.s32.totalorder %s234, 2
          %s240 = scalar_select %p239, %s234, 2
          %s241 = smul.addr %s240, 8
          %s242 = scalar_lea.vmem %s0, %s241
          %s243 = smul.u32 2, %s16
          %s244 = ssub.s32 3, %s243
          %p245 = scmp.lt.s32.totalorder %s244, 2
          %s246 = scalar_select %p245, %s244, 2
          %s247 = smul.u32 128, %s246
        $region44: #{tpu_custom_call.1} parent=39 // pred_fallthru
          _
      $region40: #{tpu_custom_call.1} parent=5 // pred_fallthru
        _
      %p248 = scmp.le.s32.totalorder 1, %s16
      %p249 = scmp.lt.s32.totalorder %s16, 3
      %p250 = pnand %p248, %p249
      %p251 = pneg %p250
      // Predicated region
      $region45: #{tpu_custom_call.1} parent=5 // pred_check
        _
      $region46: #{tpu_custom_call.1} parent=5 // pred_check_branch
        %253 = sbr.rel (%p250) target = $region48
      $region47: #{tpu_custom_call.1} parent=5 // pred_region
        %s254 = ssub.s32 %s16, 1
        %s255 = smul.u32 2, %s21
        %s256 = ssub.s32 3, %s255
        %p257 = scmp.lt.s32.totalorder %s256, 2
        %s258 = scalar_select %p257, %s256, 2
        %s259 = smul.u32 128, %s258
        %p260 = scmp.lt.s32.totalorder %s255, 2
        %s261 = scalar_select %p260, %s255, 2
        %s262 = smul.addr %s261, 8
        %s263 = scalar_lea.vmem %s0, %s262
        %p264 = pneg %p42
        %p265 = pneg %p39
        %p266 = pneg %p63
        %p267 = pneg %p60
        %p268 = pneg %p84
        %p269 = pneg %p81
        %p270 = pneg %p105
        %p271 = pneg %p102
        %p272 = pneg %p126
        %p273 = pneg %p123
        %p274 = pneg %p147
        %p275 = pneg %p144
        %p276 = pneg %p168
        %p277 = pneg %p165
        %p278 = pneg %p194
        %p279 = pneg %p191
        %s280 = sand.u32 %s181, 1
        %s281 = scalar_lea.sflag [#allocation3], %s280
        %s282 = sand.u32 %s181, 1
        %s283 = smul.addr %s282, 16
        %s284 = scalar_lea.vmem [#allocation2], %s283
        %s285 = smul.u32 2, %s21
        %s286 = ssub.s32 3, %s285
        %p287 = scmp.lt.s32.totalorder %s286, 2
        %s288 = scalar_select %p287, %s286, 2
        %s289 = smul.u32 128, %s288
        %p290 = scmp.lt.s32.totalorder %s285, 2
        %s291 = scalar_select %p290, %s285, 2
        %s292 = smul.addr %s291, 8
        %s293 = scalar_lea.vmem %s0, %s292
        %s294 = smul.u32 2, %s21
        %s295 = ssub.s32 3, %s294
        %p296 = scmp.lt.s32.totalorder %s295, 2
        %s297 = scalar_select %p296, %s295, 2
        %s298 = smul.u32 128, %s297
        %s299 = smul.u32 2, %s21
        %s300 = ssub.s32 3, %s299
        %p301 = scmp.lt.s32.totalorder %s300, 2
        %s302 = scalar_select %p301, %s300, 2
        %s303 = smul.u32 128, %s302
        %v304 = vld [vmem:[%s1] sm:$0xff]
        %v305 = vld [vmem:[%s1 + $0x8] sm:$0xff]
        %v306 = vld [vmem:[%s1 + $0x10] sm:$0xff]
        %v307 = vld [vmem:[%s1 + $0x18] sm:$0xff]
        %v308 = vld [vmem:[%s293] sm:$0xff]
        %v309 = vld [vmem:[%s293 + $0x8] sm:$0xff]
        %v310 = vld [vmem:[%s2] sm:$0xff]
        %v311 = vld [vmem:[%s2 + $0x8] sm:$0xff]
        %v312 = vld [vmem:[%s2 + $0x10] sm:$0xff]
        %v313 = vld [vmem:[%s2 + $0x18] sm:$0xff]
        %315 = vset.pattern.permute.xlu0 0
        %316 = vperm.xlu0 %315, %v310
        %v317 = vpop.permute.xlu0 %316
        %320 = vset.pattern.permute.xlu0 0
        %321 = vperm.xlu0 %320, %v311
        %v322 = vpop.permute.xlu0 %321
        %325 = vset.pattern.permute.xlu0 0
        %326 = vperm.xlu0 %325, %v312
        %v327 = vpop.permute.xlu0 %326
        %330 = vset.pattern.permute.xlu0 0
        %331 = vperm.xlu0 %330, %v313
        %v332 = vpop.permute.xlu0 %331
        %vm334 = vcmask 64512
        %v336 = vsel %vm334, %v304, 0
        %v339 = vsel %vm334, %v305, 0
        %v342 = vsel %vm334, %v306, 0
        %v345 = vsel %vm334, %v307, 0
        %347 = vmatprep.subr.mxu0 %v309
        %348 = vmatpush1.msra.mxu0 %v308
        %349 = vmatprep.subr.mxu0 0.0
        %350 = vmatpush1.msra.mxu0 0.0
        %351 = vmatprep.subr.mxu0 0.0
        %352 = vmatpush1.msra.mxu0 0.0
        %353 = vmatprep.subr.mxu0 0.0
        %354 = vmatpush1.msra.mxu0 0.0
        %355 = vmatprep.subr.mxu0 0.0
        %356 = vmatpush1.msra.mxu0 0.0
        %357 = vmatprep.subr.mxu0 0.0
        %358 = vmatpush1.msra.mxu0 0.0
        %359 = vmatprep.subr.mxu0 0.0
        %360 = vmatpush1.msra.mxu0 0.0
        %361 = vmatprep.subr.mxu0 0.0
        %362 = vmatpush1.msra.mxu0 0.0
        %363 = vmatprep.subr.mxu0 0.0
        %364 = vmatpush1.msra.mxu0 0.0
        %365 = vmatprep.subr.mxu0 0.0
        %366 = vmatpush1.msra.mxu0 0.0
        %367 = vmatprep.subr.mxu0 0.0
        %368 = vmatpush1.msra.mxu0 0.0
        %369 = vmatprep.subr.mxu0 0.0
        %370 = vmatpush1.msra.mxu0 0.0
        %371 = vmatprep.subr.mxu0 0.0
        %372 = vmatpush1.msra.mxu0 0.0
        %373 = vmatprep.subr.mxu0 0.0
        %374 = vmatpush1.msra.mxu0 0.0
        %375 = vmatprep.subr.mxu0 0.0
        %376 = vmatpush1.msra.mxu0 0.0
        %377 = vmatprep.subr.mxu0 0.0
        %378 = vmatpush1.msra.mxu0 0.0
        %379 = vmatprep.subr.mxu0 0.0
        %380 = vmatpush1.msra.mxu0 0.0
        %381 = vmatprep.subr.mxu0 0.0
        %382 = vmatpush1.msra.mxu0 0.0
        %383 = vmatprep.subr.mxu0 0.0
        %384 = vmatpush1.msra.mxu0 0.0
        %385 = vmatprep.subr.mxu0 0.0
        %386 = vmatpush1.msra.mxu0 0.0
        %387 = vmatprep.subr.mxu0 0.0
        %388 = vmatpush1.msra.mxu0 0.0
        %389 = vmatprep.subr.mxu0 0.0
        %390 = vmatpush1.msra.mxu0 0.0
        %391 = vmatprep.subr.mxu0 0.0
        %392 = vmatpush1.msra.mxu0 0.0
        %393 = vmatprep.subr.mxu0 0.0
        %394 = vmatpush1.msra.mxu0 0.0
        %395 = vmatprep.subr.mxu0 0.0
        %396 = vmatpush1.msra.mxu0 0.0
        %397 = vmatprep.subr.mxu0 0.0
        %398 = vmatpush1.msra.mxu0 0.0
        %399 = vmatprep.subr.mxu0 0.0
        %400 = vmatpush1.msra.mxu0 0.0
        %401 = vmatprep.subr.mxu0 0.0
        %402 = vmatpush1.msra.mxu0 0.0
        %403 = vmatprep.subr.mxu0 0.0
        %404 = vmatpush1.msra.mxu0 0.0
        %405 = vmatprep.subr.mxu0 0.0
        %406 = vmatpush1.msra.mxu0 0.0
        %407 = vmatprep.subr.mxu0 0.0
        %408 = vmatpush1.msra.mxu0 0.0
        %409 = vmatprep.subr.mxu0 0.0
        %410 = vmatpush1.msra.mxu0 0.0
        %411 = vmatprep.mubr.f32.mxu0 0.0
        %412 = vmatmul.mubr.f32.gmra.mrb[0].mxu0 %v336
        %v413 = vpop.f32.mrb[0].mxu0
        %v414 = vadd.f32 %v317, %v413
        %v415 = vpop.f32.mrb[0].mxu0
        %v416 = vadd.f32 %v317, %v415
        %417 = vmatprep.mubr.f32.mxu0 0.0
        %418 = vmatmul.mubr.f32.gmra.mrb[0].mxu0 %v339
        %v419 = vpop.f32.mrb[0].mxu0
        %v420 = vadd.f32 %v322, %v419
        %v421 = vpop.f32.mrb[0].mxu0
        %v422 = vadd.f32 %v322, %v421
        %423 = vmatprep.mubr.f32.mxu0 0.0
        %424 = vmatmul.mubr.f32.gmra.mrb[0].mxu0 %v342
        %v425 = vpop.f32.mrb[0].mxu0
        %v426 = vadd.f32 %v327, %v425
        %v427 = vpop.f32.mrb[0].mxu0
        %v428 = vadd.f32 %v327, %v427
        %429 = vmatprep.mubr.f32.mxu0 0.0
        %430 = vmatmul.mubr.f32.gmra.mrb[0].mxu0 %v345
        %v431 = vpop.f32.mrb[0].mxu0
        %v432 = vadd.f32 %v332, %v431
        %v433 = vpop.f32.mrb[0].mxu0
        %v434 = vadd.f32 %v332, %v433
        %435 = vdwg.mxu0
        %v436 = vmax.f32 %v414, 0.0
        %v437 = vmax.f32 %v416, 0.0
        %v438 = vmax.f32 %v420, 0.0
        %v439 = vmax.f32 %v422, 0.0
        %v440 = vmax.f32 %v426, 0.0
        %v441 = vmax.f32 %v428, 0.0
        %v442 = vmax.f32 %v432, 0.0
        %v443 = vmax.f32 %v434, 0.0
        %v444 = vld [vmem:[%s3] sm:$0xff]
        %v445 = vld [vmem:[%s3 + $0x8] sm:$0xff]
        %v446 = vld [vmem:[%s3 + $0x10] sm:$0xff]
        %v447 = vld [vmem:[%s3 + $0x18] sm:$0xff]
        %v448 = vld [vmem:[%s4] sm:$0xff]
        %v449 = vld [vmem:[%s4 + $0x8] sm:$0xff]
        %v450 = vld [vmem:[%s4 + $0x10] sm:$0xff]
        %v451 = vld [vmem:[%s4 + $0x18] sm:$0xff]
        %453 = vset.pattern.permute.xlu0 0
        %454 = vperm.xlu0 %453, %v448
        %v455 = vpop.permute.xlu0 %454
        %458 = vset.pattern.permute.xlu0 0
        %459 = vperm.xlu0 %458, %v449
        %v460 = vpop.permute.xlu0 %459
        %463 = vset.pattern.permute.xlu0 0
        %464 = vperm.xlu0 %463, %v450
        %v465 = vpop.permute.xlu0 %464
        %468 = vset.pattern.permute.xlu0 0
        %469 = vperm.xlu0 %468, %v451
        %v470 = vpop.permute.xlu0 %469
        %vm472 = vcmask 261120
        %v474 = vsel %vm472, %v444, 0
        %v477 = vsel %vm472, %v445, 0
        %v480 = vsel %vm472, %v446, 0
        %v483 = vsel %vm472, %v447, 0
        %485 = vmatprep.subr.mxu0 %v437
        %486 = vmatpush1.msra.mxu0 %v436
        %487 = vmatprep.subr.mxu0 %v439
        %488 = vmatpush1.msra.mxu0 %v438
        %489 = vmatprep.subr.mxu0 %v441
        %490 = vmatpush1.msra.mxu0 %v440
        %491 = vmatprep.subr.mxu0 %v443
        %492 = vmatpush1.msra.mxu0 %v442
        %493 = vmatprep.subr.mxu0 0.0
        %494 = vmatpush1.msra.mxu0 0.0
        %495 = vmatprep.subr.mxu0 0.0
        %496 = vmatpush1.msra.mxu0 0.0
        %497 = vmatprep.subr.mxu0 0.0
        %498 = vmatpush1.msra.mxu0 0.0
        %499 = vmatprep.subr.mxu0 0.0
        %500 = vmatpush1.msra.mxu0 0.0
        %501 = vmatprep.subr.mxu0 0.0
        %502 = vmatpush1.msra.mxu0 0.0
        %503 = vmatprep.subr.mxu0 0.0
        %504 = vmatpush1.msra.mxu0 0.0
        %505 = vmatprep.subr.mxu0 0.0
        %506 = vmatpush1.msra.mxu0 0.0
        %507 = vmatprep.subr.mxu0 0.0
        %508 = vmatpush1.msra.mxu0 0.0
        %509 = vmatprep.subr.mxu0 0.0
        %510 = vmatpush1.msra.mxu0 0.0
        %511 = vmatprep.subr.mxu0 0.0
        %512 = vmatpush1.msra.mxu0 0.0
        %513 = vmatprep.subr.mxu0 0.0
        %514 = vmatpush1.msra.mxu0 0.0
        %515 = vmatprep.subr.mxu0 0.0
        %516 = vmatpush1.msra.mxu0 0.0
        %517 = vmatprep.subr.mxu0 0.0
        %518 = vmatpush1.msra.mxu0 0.0
        %519 = vmatprep.subr.mxu0 0.0
        %520 = vmatpush1.msra.mxu0 0.0
        %521 = vmatprep.subr.mxu0 0.0
        %522 = vmatpush1.msra.mxu0 0.0
        %523 = vmatprep.subr.mxu0 0.0
        %524 = vmatpush1.msra.mxu0 0.0
        %525 = vmatprep.subr.mxu0 0.0
        %526 = vmatpush1.msra.mxu0 0.0
        %527 = vmatprep.subr.mxu0 0.0
        %528 = vmatpush1.msra.mxu0 0.0
        %529 = vmatprep.subr.mxu0 0.0
        %530 = vmatpush1.msra.mxu0 0.0
        %531 = vmatprep.subr.mxu0 0.0
        %532 = vmatpush1.msra.mxu0 0.0
        %533 = vmatprep.subr.mxu0 0.0
        %534 = vmatpush1.msra.mxu0 0.0
        %535 = vmatprep.subr.mxu0 0.0
        %536 = vmatpush1.msra.mxu0 0.0
        %537 = vmatprep.subr.mxu0 0.0
        %538 = vmatpush1.msra.mxu0 0.0
        %539 = vmatprep.subr.mxu0 0.0
        %540 = vmatpush1.msra.mxu0 0.0
        %541 = vmatprep.subr.mxu0 0.0
        %542 = vmatpush1.msra.mxu0 0.0
        %543 = vmatprep.subr.mxu0 0.0
        %544 = vmatpush1.msra.mxu0 0.0
        %545 = vmatprep.subr.mxu0 0.0
        %546 = vmatpush1.msra.mxu0 0.0
        %547 = vmatprep.subr.mxu0 0.0
        %548 = vmatpush1.msra.mxu0 0.0
        %549 = vmatprep.mubr.f32.mxu0 0.0
        %550 = vmatmul.mubr.f32.gmra.mrb[0].mxu0 %v474
        %v551 = vpop.f32.mrb[0].mxu0
        %v552 = vadd.f32 %v455, %v551
        %v553 = vpop.f32.mrb[0].mxu0
        %v554 = vadd.f32 %v455, %v553
        %555 = vmatprep.mubr.f32.mxu0 0.0
        %556 = vmatmul.mubr.f32.gmra.mrb[0].mxu0 %v477
        %v557 = vpop.f32.mrb[0].mxu0
        %v558 = vadd.f32 %v460, %v557
        %v559 = vpop.f32.mrb[0].mxu0
        %v560 = vadd.f32 %v460, %v559
        %561 = vmatprep.mubr.f32.mxu0 0.0
        %562 = vmatmul.mubr.f32.gmra.mrb[0].mxu0 %v480
        %v563 = vpop.f32.mrb[0].mxu0
        %v564 = vadd.f32 %v465, %v563
        %v565 = vpop.f32.mrb[0].mxu0
        %v566 = vadd.f32 %v465, %v565
        %567 = vmatprep.mubr.f32.mxu0 0.0
        %568 = vmatmul.mubr.f32.gmra.mrb[0].mxu0 %v483
        %v569 = vpop.f32.mrb[0].mxu0
        %v570 = vadd.f32 %v470, %v569
        %v571 = vpop.f32.mrb[0].mxu0
        %v572 = vadd.f32 %v470, %v571
        %573 = vdwg.mxu0
        %v574 = vmax.f32 %v552, 0.0
        %v575 = vmax.f32 %v554, 0.0
        %v576 = vmax.f32 %v558, 0.0
        %v577 = vmax.f32 %v560, 0.0
        %v578 = vmax.f32 %v564, 0.0
        %v579 = vmax.f32 %v566, 0.0
        %v580 = vmax.f32 %v570, 0.0
        %v581 = vmax.f32 %v572, 0.0
        %v582 = vld [vmem:[%s5] sm:$0xff]
        %v583 = vld [vmem:[%s6] sm:$0xff]
        %585 = vset.pattern.permute.xlu0 0
        %586 = vperm.xlu0 %585, %v583
        %v587 = vpop.permute.xlu0 %586
        %v590 = vsel %vm472, %v582, 0
        %592 = vmatprep.subr.mxu0 %v575
        %593 = vmatpush1.msra.mxu0 %v574
        %594 = vmatprep.subr.mxu0 %v577
        %595 = vmatpush1.msra.mxu0 %v576
        %596 = vmatprep.subr.mxu0 %v579
        %597 = vmatpush1.msra.mxu0 %v578
        %598 = vmatprep.subr.mxu0 %v581
        %599 = vmatpush1.msra.mxu0 %v580
        %600 = vmatprep.subr.mxu0 0.0
        %601 = vmatpush1.msra.mxu0 0.0
        %602 = vmatprep.subr.mxu0 0.0
        %603 = vmatpush1.msra.mxu0 0.0
        %604 = vmatprep.subr.mxu0 0.0
        %605 = vmatpush1.msra.mxu0 0.0
        %606 = vmatprep.subr.mxu0 0.0
        %607 = vmatpush1.msra.mxu0 0.0
        %608 = vmatprep.subr.mxu0 0.0
        %609 = vmatpush1.msra.mxu0 0.0
        %610 = vmatprep.subr.mxu0 0.0
        %611 = vmatpush1.msra.mxu0 0.0
        %612 = vmatprep.subr.mxu0 0.0
        %613 = vmatpush1.msra.mxu0 0.0
        %614 = vmatprep.subr.mxu0 0.0
        %615 = vmatpush1.msra.mxu0 0.0
        %616 = vmatprep.subr.mxu0 0.0
        %617 = vmatpush1.msra.mxu0 0.0
        %618 = vmatprep.subr.mxu0 0.0
        %619 = vmatpush1.msra.mxu0 0.0
        %620 = vmatprep.subr.mxu0 0.0
        %621 = vmatpush1.msra.mxu0 0.0
        %622 = vmatprep.subr.mxu0 0.0
        %623 = vmatpush1.msra.mxu0 0.0
        %624 = vmatprep.subr.mxu0 0.0
        %625 = vmatpush1.msra.mxu0 0.0
        %626 = vmatprep.subr.mxu0 0.0
        %627 = vmatpush1.msra.mxu0 0.0
        %628 = vmatprep.subr.mxu0 0.0
        %629 = vmatpush1.msra.mxu0 0.0
        %630 = vmatprep.subr.mxu0 0.0
        %631 = vmatpush1.msra.mxu0 0.0
        %632 = vmatprep.subr.mxu0 0.0
        %633 = vmatpush1.msra.mxu0 0.0
        %634 = vmatprep.subr.mxu0 0.0
        %635 = vmatpush1.msra.mxu0 0.0
        %636 = vmatprep.subr.mxu0 0.0
        %637 = vmatpush1.msra.mxu0 0.0
        %638 = vmatprep.subr.mxu0 0.0
        %639 = vmatpush1.msra.mxu0 0.0
        %640 = vmatprep.subr.mxu0 0.0
        %641 = vmatpush1.msra.mxu0 0.0
        %642 = vmatprep.subr.mxu0 0.0
        %643 = vmatpush1.msra.mxu0 0.0
        %644 = vmatprep.subr.mxu0 0.0
        %645 = vmatpush1.msra.mxu0 0.0
        %646 = vmatprep.subr.mxu0 0.0
        %647 = vmatpush1.msra.mxu0 0.0
        %648 = vmatprep.subr.mxu0 0.0
        %649 = vmatpush1.msra.mxu0 0.0
        %650 = vmatprep.subr.mxu0 0.0
        %651 = vmatpush1.msra.mxu0 0.0
        %652 = vmatprep.subr.mxu0 0.0
        %653 = vmatpush1.msra.mxu0 0.0
        %654 = vmatprep.subr.mxu0 0.0
        %655 = vmatpush1.msra.mxu0 0.0
        %656 = vmatprep.mubr.f32.mxu0 0.0
        %657 = vmatmul.mubr.f32.gmra.mrb[0].mxu0 %v590
        %v658 = vpop.f32.mrb[0].mxu0
        %v659 = vadd.f32 %v587, %v658
        %v660 = vpop.f32.mrb[0].mxu0
        %v661 = vadd.f32 %v587, %v660
        %662 = vdwg.mxu0
        %663 = vst [vmem:[%s284] sm:$0xff] %v659
        %664 = vst [vmem:[%s284 + $0x8] sm:$0xff] %v661
        %s665 = sand.u32 %s181, 1
        %s666 = scalar_lea.sflag [#allocation3], %s665
        %s667 = sand.u32 %s181, 1
        %s668 = smul.addr %s667, 16
        %s669 = scalar_lea.vmem [#allocation2], %s668
        // Predicated region
        $region49: #{tpu_custom_call.1} parent=47 // pred_check
          %p670 = pneg %p191
        $region50: #{tpu_custom_call.1} parent=47 // pred_check_branch
          %672 = sbr.rel (%p670) target = $region52
        $region51: #{tpu_custom_call.1} parent=47 // pred_region
          %s673 = smul.u32 2, %s21
          %s674 = ssub.s32 3, %s673
          %p675 = scmp.lt.s32.totalorder %s674, 2
          %s676 = scalar_select %p675, %s674, 2
          %s677 = smul.u32 128, %s676
          %s679 = ssub.s32 256, %s677
          %680 = vsyncadd %s666, %s679
          %p681 = scmp.ne.s32.totalorder 0, %s677
          %s682 = smul.addr %s673, 128
          %s683 = scalar_lea.hbm %s7, %s682
          %s684 = smul.u32 %s676, 8
          %s685 = sshll.u32 %s684, 4
          %s686 = sshll.u32 %s669, 4
          %s687 = int_to_ptr.vmem [resolvable:$true] %s686
          %689 = dma.vmem_to_hbm [thread:$0]  (%p681), %s687, %s685, %s683, %s666
        $region52: #{tpu_custom_call.1} parent=47 // pred_fallthru
          _
      $region48: #{tpu_custom_call.1} parent=5 // pred_fallthru
        _
      %p690 = scmp.le.s32.totalorder 2, %s16
      // Predicated region
      $region53: #{tpu_custom_call.1} parent=5 // pred_check
        %p691 = pneg %p690
      $region54: #{tpu_custom_call.1} parent=5 // pred_check_branch
        %693 = sbr.rel (%p691) target = $region56
      $region55: #{tpu_custom_call.1} parent=5 // pred_region
        %s694 = ssub.s32 %s16, 2
        // Predicated region
        $region57: #{tpu_custom_call.1} parent=55 // pred_check
          %p695 = pneg %p197
        $region58: #{tpu_custom_call.1} parent=55 // pred_check_branch
          %697 = sbr.rel (%p695) target = $region60
        $region59: #{tpu_custom_call.1} parent=55 // pred_region
          %s698 = sand.u32 %s182, 1
          %s699 = scalar_lea.sflag [#allocation3], %s698
          %s700 = sand.u32 %s182, 1
          %s701 = smul.addr %s700, 16
          %s702 = scalar_lea.vmem [#allocation2], %s701
          %703 = dma.done %s699, 256
        $region60: #{tpu_custom_call.1} parent=55 // pred_fallthru
          _
      $region56: #{tpu_custom_call.1} parent=5 // pred_fallthru
        _
    $region6: #{tpu_custom_call.1} parent=1 // loop_footer
      %s20 = sadd.s32 1, %s16
    $region7: #{tpu_custom_call.1} parent=1 // loop_footer_branch
      %15 = sbr.rel target = $region3
    $region8: #{tpu_custom_call.1} parent=1 // loop_exit
      _
    %704 = vsyncpa [#allocation3], 1
    %s705 = scalar_lea.sflag [#allocation3], 1
    %706 = vsyncpa %s705, 1

</llo_original>
